<compile_context>
chip_gen: v7x
topology: tpu7x:2x2x1
jax: 0.10.0
libtpu: 0.0.40
codegen_flags: <defaults>
</compile_context>

<pallas_src>
import jax
import jax.numpy as jnp
from jax.experimental import pallas as pl
from jax.experimental.pallas import tpu as pltpu


def _round_up(x, m):
    return ((x + m - 1) // m) * m


def relation_decoder_kernel(feats_ref, sel_ref, w_ref, b_ref, o_ref):
    # feats_ref: (ts, K, D)   relation features (native dtype), K = A*C
    # sel_ref:   (ts, K)      f32 selection weights (score * one_hot(ixs))
    # w_ref:     (D, Jp)      Linear weight, transposed and lane-padded
    # b_ref:     (1, Jp)      Linear bias, lane-padded
    # o_ref:     (ts, Jp)     f32 output tile
    ts, K, D = feats_ref.shape

    # Fused gather + score-weighted reduction over the A*C axis, accumulated in f32.
    # Chunked along K (8 sublanes at a time) so the f32 upcast of bf16 feats never
    # materializes a full (ts, K, D) temporary in VMEM; VPU work stays hidden under
    # the feats DMA (the kernel is HBM-bound on feats).
    acc = jnp.zeros((ts, D), jnp.float32)
    CH = 8
    for k0 in range(0, K, CH):
        ch = min(CH, K - k0)
        fe = feats_ref[:, k0:k0 + ch, :].astype(jnp.float32)   # (ts, ch, D)
        se = sel_ref[:, k0:k0 + ch].astype(jnp.float32)        # (ts, ch)
        acc = acc + jnp.sum(se[:, :, None] * fe, axis=1)       # (ts, D)

    # Final Linear on the MXU in the weight's native dtype, f32 accumulation.
    wt = w_ref[...]
    out = jnp.dot(acc.astype(wt.dtype), wt,
                  preferred_element_type=jnp.float32)           # (ts, Jp)
    out = out + b_ref[...].astype(jnp.float32)                  # broadcast (1, Jp)
    o_ref[...] = out.astype(o_ref.dtype)


def relation_decoder(rel_feats, total_ann_score, ixs, w, b, *, ts=None):
    """rel_feats: (S, A, C, D); total_ann_score: (S, A); ixs: (S, A) int;
    w: (D, J) = nn.Linear weight transposed; b: (J,). Returns (S, J) float32."""
    S, A, C, D = rel_feats.shape
    J = w.shape[1]
    K = A * C
    itemsize = jnp.dtype(rel_feats.dtype).itemsize

    # Lane-dense output: pad Linear columns up to a multiple of 128 (pad sliced off).
    Jp = _round_up(J, 128)
    if Jp != J:
        w = jnp.pad(w, ((0, 0), (0, Jp - J)))
        b = jnp.pad(b, ((0, Jp - J),))
    b2 = b.reshape(1, Jp)
    w_itemsize = jnp.dtype(w.dtype).itemsize

    # VMEM-budget-driven sentence tile: double-buffered feats <= ~10 MiB keeps the
    # whole pipeline inside v5e's 16 MiB scoped default (and far below v6e/v7x caps).
    if ts is None:
        budget = 10 * 1024 * 1024
        ts = budget // (2 * K * D * itemsize)
        ts = min(512, ts)
    ts = max(8, (int(ts) // 8) * 8)
    ts = min(ts, _round_up(S, 8))   # don't over-allocate when S is small

    # Precompute the fused gather+bmm selection matrix in XLA (tiny: S*K f32).
    score = total_ann_score.astype(jnp.float32)                                 # (S, A)
    onehot = (ixs.astype(jnp.int32)[:, :, None]
              == jnp.arange(C, dtype=jnp.int32)[None, None, :])                 # (S, A, C)
    sel = (score[:, :, None] * onehot.astype(jnp.float32)).reshape(S, K)        # (S, K)

    # Flatten (A, C) -> K; NO padding/copy of rel_feats (HBM-bound input).
    feats_flat = rel_feats.reshape(S, K, D)

    grid = (pl.cdiv(S, ts),)   # last tile is partial; Pallas clips reads/writes

    flops = 2 * S * (K * D + D * Jp)
    bytes_accessed = (S * K * D * itemsize       # feats read
                      + S * K * 4                # sel read
                      + D * Jp * w_itemsize      # weight read
                      + Jp * 4                   # bias read
                      + S * Jp * 4)              # output write

    out = pl.pallas_call(
        relation_decoder_kernel,
        out_shape=jax.ShapeDtypeStruct((S, Jp), jnp.float32),
        grid_spec=pl.GridSpec(
            grid=grid,
            in_specs=[
                pl.BlockSpec((ts, K, D), lambda t: (t, 0, 0)),   # feats tile
                pl.BlockSpec((ts, K), lambda t: (t, 0)),         # selection weights
                pl.BlockSpec((D, Jp), lambda t: (0, 0)),         # weight, replicated
                pl.BlockSpec((1, Jp), lambda t: (0, 0)),         # bias, replicated
            ],
            out_specs=pl.BlockSpec((ts, Jp), lambda t: (t, 0)),  # lane-dense 2-D tile
        ),
        compiler_params=pltpu.CompilerParams(
            # Shards sentence tiles across TensorCores on v7x; no-op on v5e/v6e.
            dimension_semantics=("parallel",),
        ),
        cost_estimate=pl.CostEstimate(
            flops=flops, transcendentals=0, bytes_accessed=bytes_accessed),
    )(feats_flat, sel, w, b2)

    return out[:, :J] if Jp != J else out


def relation_decoder_ref(rel_feats, total_ann_score, ixs, w, b):
    """Pure-JAX reference mirroring the PyTorch forward."""
    idx = ixs.astype(jnp.int32)[:, :, None, None]                       # (S, A, 1, 1)
    gathered = jnp.take_along_axis(rel_feats, idx, axis=2)[:, :, 0, :]  # (S, A, D)
    fuse = jnp.einsum('sa,sad->sd', total_ann_score, gathered)          # (S, D)
    return fuse @ w + b[None, :]                                        # (S, J)


if __name__ == "__main__":
    # opt = {'jemb_dim': 64, 'word_vec_size': 32 (unused in forward), 'fc7_dim': 123}
    S, A, C = 10, 8, 4          # sent_num (non-multiple of 8 -> partial tile), ann_num, cxt_num
    fc7_dim = 123
    D = fc7_dim + 5             # 128
    J = 64                      # jemb_dim

    key = jax.random.PRNGKey(0)
    k1, k2, k3, k4, k5 = jax.random.split(key, 5)

    rel_feats = jax.random.normal(k1, (S, A, C, D), dtype=jnp.float32)
    total_ann_score = jax.nn.softmax(
        jax.random.normal(k2, (S, A), dtype=jnp.float32), axis=-1)
    ixs = jax.random.randint(k3, (S, A), 0, C, dtype=jnp.int32)

    # Deterministic synthetic Linear(fc7_dim + 5, jemb_dim) parameters.
    w_torch = jax.random.normal(k4, (J, D), dtype=jnp.float32) * 0.02   # (out, in) like nn.Linear
    b = jax.random.normal(k5, (J,), dtype=jnp.float32) * 0.02
    w = w_torch.T                                                        # (D, J) for the kernel

    ref = relation_decoder_ref(rel_feats, total_ann_score, ixs, w, b)

    # 1) Default tile (single grid step, partial tile clipped without any padding copy).
    out = jax.block_until_ready(relation_decoder(rel_feats, total_ann_score, ixs, w, b))
    assert out.shape == (S, J)
    assert jnp.allclose(out, ref, atol=1e-4, rtol=1e-4), "mismatch vs reference (default ts)"

    # 2) Forced small tile: multi-step grid with a partial last tile (S=10, ts=8).
    out2 = jax.block_until_ready(
        relation_decoder(rel_feats, total_ann_score, ixs, w, b, ts=8))
    assert jnp.allclose(out2, ref, atol=1e-4, rtol=1e-4), "mismatch vs reference (ts=8)"

    # 3) bf16-streamed features (halved HBM traffic path); f32 accumulation in-kernel.
    rel_feats_bf16 = rel_feats.astype(jnp.bfloat16)
    ref_bf16 = relation_decoder_ref(
        rel_feats_bf16.astype(jnp.float32), total_ann_score, ixs, w, b)
    out3 = jax.block_until_ready(
        relation_decoder(rel_feats_bf16, total_ann_score, ixs, w, b))
    assert jnp.allclose(out3, ref_bf16, atol=1e-3, rtol=1e-3), "mismatch vs reference (bf16 feats)"

    print("KERNEL_OK")
</pallas_src>

<mosaic_0001>
module attributes {stable_mosaic.version = 11 : i64} {
  func.func @relation_decoder_kernel(%arg0: i32, %arg1: memref<16x32x128xf32, #tpu.memory_space<vmem>>, %arg2: memref<16x32xf32, #tpu.memory_space<vmem>>, %arg3: memref<128x128xf32, #tpu.memory_space<vmem>>, %arg4: memref<1x128xf32, #tpu.memory_space<vmem>>, %arg5: memref<16x128xf32, #tpu.memory_space<vmem>>) attributes {dimension_semantics = [#tpu.dimension_semantics<parallel>], iteration_bounds = array<i64: 1>, scalar_prefetch = 0 : i64, scratch_operands = 0 : i64, tpu.core_type = #tpu.core_type<tc>, window_params = [{transform_indices = @transform_0, window_bounds = array<i64: 16, 32, 128>}, {transform_indices = @transform_1, window_bounds = array<i64: 16, 32>}, {pipeline_mode = #tpu.pipeline_mode<synchronous>, transform_indices = @transform_2, window_bounds = array<i64: 128, 128>}, {pipeline_mode = #tpu.pipeline_mode<synchronous>, transform_indices = @transform_3, window_bounds = array<i64: 1, 128>}, {transform_indices = @transform_4, window_bounds = array<i64: 16, 128>}]} {
    %cst = arith.constant 0.000000e+00 : f32
    %0 = vector.broadcast %cst : f32 to vector<16x128xf32>
    %c0 = arith.constant 0 : index
    %c0_0 = arith.constant 0 : index
    %c0_1 = arith.constant 0 : index
    %1 = vector.load %arg1[%c0, %c0_0, %c0_1] : memref<16x32x128xf32, #tpu.memory_space<vmem>>, vector<16x8x128xf32>
    %c0_2 = arith.constant 0 : index
    %c0_3 = arith.constant 0 : index
    %2 = vector.load %arg2[%c0_2, %c0_3] : memref<16x32xf32, #tpu.memory_space<vmem>>, vector<16x8xf32>
    %3 = vector.shape_cast %2 : vector<16x8xf32> to vector<16x8x1xf32>
    %4 = vector.broadcast %3 : vector<16x8x1xf32> to vector<16x8x128xf32>
    %5 = arith.mulf %4, %1 : vector<16x8x128xf32>
    %cst_4 = arith.constant dense<0.000000e+00> : vector<16x128xf32>
    %6 = vector.multi_reduction <add>, %5, %cst_4 [1] : vector<16x8x128xf32> to vector<16x128xf32>
    %7 = arith.addf %0, %6 : vector<16x128xf32>
    %c0_5 = arith.constant 0 : index
    %c8 = arith.constant 8 : index
    %c0_6 = arith.constant 0 : index
    %8 = vector.load %arg1[%c0_5, %c8, %c0_6] : memref<16x32x128xf32, #tpu.memory_space<vmem>>, vector<16x8x128xf32>
    %c0_7 = arith.constant 0 : index
    %c8_8 = arith.constant 8 : index
    %9 = vector.load %arg2[%c0_7, %c8_8] : memref<16x32xf32, #tpu.memory_space<vmem>>, vector<16x8xf32>
    %10 = vector.shape_cast %9 : vector<16x8xf32> to vector<16x8x1xf32>
    %11 = vector.broadcast %10 : vector<16x8x1xf32> to vector<16x8x128xf32>
    %12 = arith.mulf %11, %8 : vector<16x8x128xf32>
    %cst_9 = arith.constant dense<0.000000e+00> : vector<16x128xf32>
    %13 = vector.multi_reduction <add>, %12, %cst_9 [1] : vector<16x8x128xf32> to vector<16x128xf32>
    %14 = arith.addf %7, %13 : vector<16x128xf32>
    %c0_10 = arith.constant 0 : index
    %c16 = arith.constant 16 : index
    %c0_11 = arith.constant 0 : index
    %15 = vector.load %arg1[%c0_10, %c16, %c0_11] : memref<16x32x128xf32, #tpu.memory_space<vmem>>, vector<16x8x128xf32>
    %c0_12 = arith.constant 0 : index
    %c16_13 = arith.constant 16 : index
    %16 = vector.load %arg2[%c0_12, %c16_13] : memref<16x32xf32, #tpu.memory_space<vmem>>, vector<16x8xf32>
    %17 = vector.shape_cast %16 : vector<16x8xf32> to vector<16x8x1xf32>
    %18 = vector.broadcast %17 : vector<16x8x1xf32> to vector<16x8x128xf32>
    %19 = arith.mulf %18, %15 : vector<16x8x128xf32>
    %cst_14 = arith.constant dense<0.000000e+00> : vector<16x128xf32>
    %20 = vector.multi_reduction <add>, %19, %cst_14 [1] : vector<16x8x128xf32> to vector<16x128xf32>
    %21 = arith.addf %14, %20 : vector<16x128xf32>
    %c0_15 = arith.constant 0 : index
    %c24 = arith.constant 24 : index
    %c0_16 = arith.constant 0 : index
    %22 = vector.load %arg1[%c0_15, %c24, %c0_16] : memref<16x32x128xf32, #tpu.memory_space<vmem>>, vector<16x8x128xf32>
    %c0_17 = arith.constant 0 : index
    %c24_18 = arith.constant 24 : index
    %23 = vector.load %arg2[%c0_17, %c24_18] : memref<16x32xf32, #tpu.memory_space<vmem>>, vector<16x8xf32>
    %24 = vector.shape_cast %23 : vector<16x8xf32> to vector<16x8x1xf32>
    %25 = vector.broadcast %24 : vector<16x8x1xf32> to vector<16x8x128xf32>
    %26 = arith.mulf %25, %22 : vector<16x8x128xf32>
    %cst_19 = arith.constant dense<0.000000e+00> : vector<16x128xf32>
    %27 = vector.multi_reduction <add>, %26, %cst_19 [1] : vector<16x8x128xf32> to vector<16x128xf32>
    %28 = arith.addf %21, %27 : vector<16x128xf32>
    %c0_20 = arith.constant 0 : index
    %c0_21 = arith.constant 0 : index
    %29 = vector.load %arg3[%c0_20, %c0_21] : memref<128x128xf32, #tpu.memory_space<vmem>>, vector<128x128xf32>
    %cst_22 = arith.constant dense<0.000000e+00> : vector<16x128xf32>
    %30 = tpu.matmul %28, %29, %cst_22 {dimension_numbers = #tpu.dot_dimension_numbers<[1], [0], [0], [1], [0, 0, 1, 1], [], []>} : vector<16x128xf32>, vector<128x128xf32>, vector<16x128xf32> -> vector<16x128xf32>
    %c0_23 = arith.constant 0 : index
    %c0_24 = arith.constant 0 : index
    %31 = vector.load %arg4[%c0_23, %c0_24] : memref<1x128xf32, #tpu.memory_space<vmem>>, vector<1x128xf32>
    %32 = vector.broadcast %31 : vector<1x128xf32> to vector<16x128xf32>
    %33 = arith.addf %30, %32 : vector<16x128xf32>
    %c0_25 = arith.constant 0 : index
    %c0_26 = arith.constant 0 : index
    %34 = vector.load %arg5[%c0_25, %c0_26] : memref<16x128xf32, #tpu.memory_space<vmem>>, vector<16x128xf32>
    tpu.vector_store %arg5[%c0_25, %c0_26], %33 {strides = array<i32>} : memref<16x128xf32, #tpu.memory_space<vmem>>, vector<16x128xf32>,
    return
  }
  func.func @transform_0(%arg0: i32) -> (i32, i32, i32) {
    %c0_i32 = arith.constant 0 : i32
    %c0_i32_0 = arith.constant 0 : i32
    %c0_i32_1 = arith.constant 0 : i32
    return %arg0, %c0_i32, %c0_i32_0 : i32, i32, i32
  }
  func.func @transform_1(%arg0: i32) -> (i32, i32) {
    %c0_i32 = arith.constant 0 : i32
    %c0_i32_0 = arith.constant 0 : i32
    return %arg0, %c0_i32 : i32, i32
  }
  func.func @transform_2(%arg0: i32) -> (i32, i32) {
    %c0_i32 = arith.constant 0 : i32
    %c0_i32_0 = arith.constant 0 : i32
    %c0_i32_1 = arith.constant 0 : i32
    return %c0_i32, %c0_i32_0 : i32, i32
  }
  func.func @transform_3(%arg0: i32) -> (i32, i32) {
    %c0_i32 = arith.constant 0 : i32
    %c0_i32_0 = arith.constant 0 : i32
    %c0_i32_1 = arith.constant 0 : i32
    return %c0_i32, %c0_i32_0 : i32, i32
  }
  func.func @transform_4(%arg0: i32) -> (i32, i32) {
    %c0_i32 = arith.constant 0 : i32
    %c0_i32_0 = arith.constant 0 : i32
    return %arg0, %c0_i32 : i32, i32
  }
}

</mosaic_0001>

<llo_original>
// kernel: tpu_custom_call.1
$region0: #{tpu_custom_call.1}
  #allocation0 [shape = 'u32[]', space=smem, size = 0x4, offset = 0x4, fixed_abs, tag = 'smem constant byte address 0x4 - core index']
  #allocation1 [shape = 'u32[144,128]{1,0:T(1,128)}', space=vmem, size = 0x12000, scoped, tag = 'internal scratch']
  %s0 = inlined_call_operand.hbm [shape: f32[10,32,128], index: 0, kind: input, shape index: {}]
  %s1 = inlined_call_operand.hbm [shape: f32[10,32], index: 1, kind: input, shape index: {}]
  %s2 = inlined_call_operand.hbm [shape: f32[128,128], index: 2, kind: input, shape index: {}]
  %s3 = inlined_call_operand.vmem [shape: f32[1,128], index: 3, kind: input, shape index: {}]
  %s4 = inlined_call_operand.hbm [shape: f32[10,128], index: 4, kind: output, shape index: {}]
  %s5 = sld [smem:[#allocation0]]
  $region38: #{tpu_custom_call.1} parent=0
    _
  %s7 = ssub.s32 1, %s5
  %s8 = scalar_select 0, %s7, %s5
  $region1: #{tpu_custom_call.1} parent=0
    #allocation2 [shape = 'u8[262144]{0}', space=vmem, size = 0x40000, scoped, tag = 'input window, operand 0, single buffered']
    #allocation3 [shape = 's32[1]{0}', space=sflag, size = 0x4, scoped, tag = 'scoped memory for tpu_custom_call.1']
    #allocation4 [shape = 's32[1]{0}', space=sflag, size = 0x4, scoped, tag = 'scoped memory for tpu_custom_call.1']
    #allocation5 [shape = 'u8[8192]{0}', space=vmem, size = 0x2000, scoped, tag = 'input window, operand 1, single buffered']
    #allocation6 [shape = 's32[1]{0}', space=sflag, size = 0x4, scoped, tag = 'scoped memory for tpu_custom_call.1']
    #allocation7 [shape = 'u8[65536]{0}', space=vmem, size = 0x10000, scoped, tag = 'input window, operand 2, single buffered']
    #allocation8 [shape = 'u8[8192]{0}', space=vmem, size = 0x2000, scoped, tag = 'output window, operand 0, single buffered']
    %9 = vsyncpa [#allocation3], 0
    %10 = vsyncpa [#allocation6], 0
    %11 = vsyncpa [#allocation4], 0
    // Predicated region
    $region2: #{tpu_custom_call.1} parent=1 // pred_check
      _
    $region3: #{tpu_custom_call.1} parent=1 // pred_check_branch
      %13 = sbr.rel (0) target = $region5
    $region4: #{tpu_custom_call.1} parent=1 // pred_region
      %s15 = ssub.s32 8192, 5120
      %16 = vsyncadd [#allocation3], %s15
      %s17 = sshll.u32 [#allocation2], 4
      %s18 = int_to_ptr.vmem [resolvable:$true] %s17
      %23 = dma.hbm_to_vmem [thread:$0]  %s0, 5120, %s18, [#allocation3], 128, 128, 8
    $region5: #{tpu_custom_call.1} parent=1 // pred_fallthru
      _
    // Predicated region
    $region6: #{tpu_custom_call.1} parent=1 // pred_check
      _
    $region7: #{tpu_custom_call.1} parent=1 // pred_check_branch
      %25 = sbr.rel (0) target = $region9
    $region8: #{tpu_custom_call.1} parent=1 // pred_region
      %s27 = ssub.s32 256, 256
      %28 = vsyncadd [#allocation6], %s27
      %s29 = sshll.u32 [#allocation5], 4
      %s30 = int_to_ptr.vmem [resolvable:$true] %s29
      %35 = dma.hbm_to_vmem [thread:$0]  %s1, 256, %s30, [#allocation6], 128, 128, 8
    $region9: #{tpu_custom_call.1} parent=1 // pred_fallthru
      _
    // Predicated region
    $region10: #{tpu_custom_call.1} parent=1 // pred_check
      _
    $region11: #{tpu_custom_call.1} parent=1 // pred_check_branch
      %37 = sbr.rel (0) target = $region13
    $region12: #{tpu_custom_call.1} parent=1 // pred_region
      %s39 = ssub.s32 2048, 2048
      %40 = vsyncadd [#allocation6], %s39
      %s41 = sshll.u32 [#allocation7], 4
      %s42 = int_to_ptr.vmem [resolvable:$true] %s41
      %47 = dma.hbm_to_vmem [thread:$0]  %s2, 2048, %s42, [#allocation6], 128, 128, 8
    $region13: #{tpu_custom_call.1} parent=1 // pred_fallthru
      _
    // Predicated region
    $region14: #{tpu_custom_call.1} parent=1 // pred_check
      _
    $region15: #{tpu_custom_call.1} parent=1 // pred_check_branch
      %49 = sbr.rel (0) target = $region17
    $region16: #{tpu_custom_call.1} parent=1 // pred_region
      _
    $region17: #{tpu_custom_call.1} parent=1 // pred_fallthru
      _
    // Predicated region
    $region18: #{tpu_custom_call.1} parent=1 // pred_check
      _
    $region19: #{tpu_custom_call.1} parent=1 // pred_check_branch
      %51 = sbr.rel (0) target = $region21
    $region20: #{tpu_custom_call.1} parent=1 // pred_region
      %52 = dma.done [#allocation3], 8192
    $region21: #{tpu_custom_call.1} parent=1 // pred_fallthru
      _
    // Predicated region
    $region22: #{tpu_custom_call.1} parent=1 // pred_check
      _
    $region23: #{tpu_custom_call.1} parent=1 // pred_check_branch
      %54 = sbr.rel (0) target = $region25
    $region24: #{tpu_custom_call.1} parent=1 // pred_region
      %55 = dma.done [#allocation6], 256
    $region25: #{tpu_custom_call.1} parent=1 // pred_fallthru
      _
    // Predicated region
    $region26: #{tpu_custom_call.1} parent=1 // pred_check
      _
    $region27: #{tpu_custom_call.1} parent=1 // pred_check_branch
      %57 = sbr.rel (0) target = $region29
    $region28: #{tpu_custom_call.1} parent=1 // pred_region
      %58 = dma.done [#allocation6], 2048
    $region29: #{tpu_custom_call.1} parent=1 // pred_fallthru
      _
    %v59 = vld [vmem:[#allocation2] sm:$0xff]
    %v60 = vld [vmem:[#allocation2 + $0x20] sm:$0xff]
    %v61 = vld [vmem:[#allocation2 + $0x40] sm:$0xff]
    %v62 = vld [vmem:[#allocation2 + $0x60] sm:$0xff]
    %v63 = vld [vmem:[#allocation2 + $0x80] sm:$0xff]
    %v64 = vld [vmem:[#allocation2 + $0xa0] sm:$0xff]
    %v65 = vld [vmem:[#allocation2 + $0xc0] sm:$0xff]
    %v66 = vld [vmem:[#allocation2 + $0xe0] sm:$0xff]
    %v67 = vld [vmem:[#allocation2 + $0x100] sm:$0xff]
    %v68 = vld [vmem:[#allocation2 + $0x120] sm:$0xff]
    %v69 = vld [vmem:[#allocation2 + $0x140] sm:$0xff]
    %v70 = vld [vmem:[#allocation2 + $0x160] sm:$0xff]
    %v71 = vld [vmem:[#allocation2 + $0x180] sm:$0xff]
    %v72 = vld [vmem:[#allocation2 + $0x1a0] sm:$0xff]
    %v73 = vld [vmem:[#allocation2 + $0x1c0] sm:$0xff]
    %v74 = vld [vmem:[#allocation2 + $0x1e0] sm:$0xff]
    %v75 = vld [vmem:[#allocation5] sm:$0xff]
    %v76 = vld [vmem:[#allocation5 + $0x8] sm:$0xff]
    %v77 = vlaneseq
    %v78 = vshrl.u32 %v77, 7
    %v79 = vsub.s32 0, %v78
    %v80 = vrot.slane %v75, %v79
    %82 = vbcast.lane.b32.xlu0 %v80, 256
    %v83 = vpop.permute.xlu0 %82
    %v84 = vlaneseq
    %v85 = vshrl.u32 %v84, 7
    %v86 = vsub.s32 1, %v85
    %v87 = vrot.slane %v75, %v86
    %89 = vbcast.lane.b32.xlu0 %v87, 256
    %v90 = vpop.permute.xlu0 %89
    %v91 = vlaneseq
    %v92 = vshrl.u32 %v91, 7
    %v93 = vsub.s32 2, %v92
    %v94 = vrot.slane %v75, %v93
    %96 = vbcast.lane.b32.xlu0 %v94, 256
    %v97 = vpop.permute.xlu0 %96
    %v98 = vlaneseq
    %v99 = vshrl.u32 %v98, 7
    %v100 = vsub.s32 3, %v99
    %v101 = vrot.slane %v75, %v100
    %103 = vbcast.lane.b32.xlu0 %v101, 256
    %v104 = vpop.permute.xlu0 %103
    %v105 = vlaneseq
    %v106 = vshrl.u32 %v105, 7
    %v107 = vsub.s32 4, %v106
    %v108 = vrot.slane %v75, %v107
    %110 = vbcast.lane.b32.xlu0 %v108, 256
    %v111 = vpop.permute.xlu0 %110
    %v112 = vlaneseq
    %v113 = vshrl.u32 %v112, 7
    %v114 = vsub.s32 5, %v113
    %v115 = vrot.slane %v75, %v114
    %117 = vbcast.lane.b32.xlu0 %v115, 256
    %v118 = vpop.permute.xlu0 %117
    %v119 = vlaneseq
    %v120 = vshrl.u32 %v119, 7
    %v121 = vsub.s32 6, %v120
    %v122 = vrot.slane %v75, %v121
    %124 = vbcast.lane.b32.xlu0 %v122, 256
    %v125 = vpop.permute.xlu0 %124
    %v126 = vlaneseq
    %v127 = vshrl.u32 %v126, 7
    %v128 = vsub.s32 7, %v127
    %v129 = vrot.slane %v75, %v128
    %131 = vbcast.lane.b32.xlu0 %v129, 256
    %v132 = vpop.permute.xlu0 %131
    %v133 = vlaneseq
    %v134 = vshrl.u32 %v133, 7
    %v135 = vsub.s32 0, %v134
    %v136 = vrot.slane %v76, %v135
    %138 = vbcast.lane.b32.xlu0 %v136, 256
    %v139 = vpop.permute.xlu0 %138
    %v140 = vlaneseq
    %v141 = vshrl.u32 %v140, 7
    %v142 = vsub.s32 1, %v141
    %v143 = vrot.slane %v76, %v142
    %145 = vbcast.lane.b32.xlu0 %v143, 256
    %v146 = vpop.permute.xlu0 %145
    %v147 = vlaneseq
    %v148 = vshrl.u32 %v147, 7
    %v149 = vsub.s32 2, %v148
    %v150 = vrot.slane %v76, %v149
    %152 = vbcast.lane.b32.xlu0 %v150, 256
    %v153 = vpop.permute.xlu0 %152
    %v154 = vlaneseq
    %v155 = vshrl.u32 %v154, 7
    %v156 = vsub.s32 3, %v155
    %v157 = vrot.slane %v76, %v156
    %159 = vbcast.lane.b32.xlu0 %v157, 256
    %v160 = vpop.permute.xlu0 %159
    %v161 = vlaneseq
    %v162 = vshrl.u32 %v161, 7
    %v163 = vsub.s32 4, %v162
    %v164 = vrot.slane %v76, %v163
    %166 = vbcast.lane.b32.xlu0 %v164, 256
    %v167 = vpop.permute.xlu0 %166
    %v168 = vlaneseq
    %v169 = vshrl.u32 %v168, 7
    %v170 = vsub.s32 5, %v169
    %v171 = vrot.slane %v76, %v170
    %173 = vbcast.lane.b32.xlu0 %v171, 256
    %v174 = vpop.permute.xlu0 %173
    %v175 = vlaneseq
    %v176 = vshrl.u32 %v175, 7
    %v177 = vsub.s32 6, %v176
    %v178 = vrot.slane %v76, %v177
    %180 = vbcast.lane.b32.xlu0 %v178, 256
    %v181 = vpop.permute.xlu0 %180
    %v182 = vlaneseq
    %v183 = vshrl.u32 %v182, 7
    %v184 = vsub.s32 7, %v183
    %v185 = vrot.slane %v76, %v184
    %187 = vbcast.lane.b32.xlu0 %v185, 256
    %v188 = vpop.permute.xlu0 %187
    %v189 = vmul.f32 %v83, %v59
    %v190 = vmul.f32 %v90, %v60
    %v191 = vmul.f32 %v97, %v61
    %v192 = vmul.f32 %v104, %v62
    %v193 = vmul.f32 %v111, %v63
    %v194 = vmul.f32 %v118, %v64
    %v195 = vmul.f32 %v125, %v65
    %v196 = vmul.f32 %v132, %v66
    %v197 = vmul.f32 %v139, %v67
    %v198 = vmul.f32 %v146, %v68
    %v199 = vmul.f32 %v153, %v69
    %v200 = vmul.f32 %v160, %v70
    %v201 = vmul.f32 %v167, %v71
    %v202 = vmul.f32 %v174, %v72
    %v203 = vmul.f32 %v181, %v73
    %v204 = vmul.f32 %v188, %v74
    %v205 = vrot.slane %v189, 4
    %v206 = vadd.f32 %v189, %v205
    %v207 = vrot.slane %v206, 2
    %v208 = vadd.f32 %v206, %v207
    %v209 = vrot.slane %v208, 1
    %v210 = vadd.f32 %v208, %v209
    %v211 = vrot.slane %v190, 4
    %v212 = vadd.f32 %v190, %v211
    %v213 = vrot.slane %v212, 2
    %v214 = vadd.f32 %v212, %v213
    %v215 = vrot.slane %v214, 1
    %v216 = vadd.f32 %v214, %v215
    %v217 = vrot.slane %v191, 4
    %v218 = vadd.f32 %v191, %v217
    %v219 = vrot.slane %v218, 2
    %v220 = vadd.f32 %v218, %v219
    %v221 = vrot.slane %v220, 1
    %v222 = vadd.f32 %v220, %v221
    %v223 = vrot.slane %v192, 4
    %v224 = vadd.f32 %v192, %v223
    %v225 = vrot.slane %v224, 2
    %v226 = vadd.f32 %v224, %v225
    %v227 = vrot.slane %v226, 1
    %v228 = vadd.f32 %v226, %v227
    %v229 = vrot.slane %v193, 4
    %v230 = vadd.f32 %v193, %v229
    %v231 = vrot.slane %v230, 2
    %v232 = vadd.f32 %v230, %v231
    %v233 = vrot.slane %v232, 1
    %v234 = vadd.f32 %v232, %v233
    %v235 = vrot.slane %v194, 4
    %v236 = vadd.f32 %v194, %v235
    %v237 = vrot.slane %v236, 2
    %v238 = vadd.f32 %v236, %v237
    %v239 = vrot.slane %v238, 1
    %v240 = vadd.f32 %v238, %v239
    %v241 = vrot.slane %v195, 4
    %v242 = vadd.f32 %v195, %v241
    %v243 = vrot.slane %v242, 2
    %v244 = vadd.f32 %v242, %v243
    %v245 = vrot.slane %v244, 1
    %v246 = vadd.f32 %v244, %v245
    %v247 = vrot.slane %v196, 4
    %v248 = vadd.f32 %v196, %v247
    %v249 = vrot.slane %v248, 2
    %v250 = vadd.f32 %v248, %v249
    %v251 = vrot.slane %v250, 1
    %v252 = vadd.f32 %v250, %v251
    %v253 = vrot.slane %v197, 4
    %v254 = vadd.f32 %v197, %v253
    %v255 = vrot.slane %v254, 2
    %v256 = vadd.f32 %v254, %v255
    %v257 = vrot.slane %v256, 1
    %v258 = vadd.f32 %v256, %v257
    %v259 = vrot.slane %v198, 4
    %v260 = vadd.f32 %v198, %v259
    %v261 = vrot.slane %v260, 2
    %v262 = vadd.f32 %v260, %v261
    %v263 = vrot.slane %v262, 1
    %v264 = vadd.f32 %v262, %v263
    %v265 = vrot.slane %v199, 4
    %v266 = vadd.f32 %v199, %v265
    %v267 = vrot.slane %v266, 2
    %v268 = vadd.f32 %v266, %v267
    %v269 = vrot.slane %v268, 1
    %v270 = vadd.f32 %v268, %v269
    %v271 = vrot.slane %v200, 4
    %v272 = vadd.f32 %v200, %v271
    %v273 = vrot.slane %v272, 2
    %v274 = vadd.f32 %v272, %v273
    %v275 = vrot.slane %v274, 1
    %v276 = vadd.f32 %v274, %v275
    %v277 = vrot.slane %v201, 4
    %v278 = vadd.f32 %v201, %v277
    %v279 = vrot.slane %v278, 2
    %v280 = vadd.f32 %v278, %v279
    %v281 = vrot.slane %v280, 1
    %v282 = vadd.f32 %v280, %v281
    %v283 = vrot.slane %v202, 4
    %v284 = vadd.f32 %v202, %v283
    %v285 = vrot.slane %v284, 2
    %v286 = vadd.f32 %v284, %v285
    %v287 = vrot.slane %v286, 1
    %v288 = vadd.f32 %v286, %v287
    %v289 = vrot.slane %v203, 4
    %v290 = vadd.f32 %v203, %v289
    %v291 = vrot.slane %v290, 2
    %v292 = vadd.f32 %v290, %v291
    %v293 = vrot.slane %v292, 1
    %v294 = vadd.f32 %v292, %v293
    %v295 = vrot.slane %v204, 4
    %v296 = vadd.f32 %v204, %v295
    %v297 = vrot.slane %v296, 2
    %v298 = vadd.f32 %v296, %v297
    %v299 = vrot.slane %v298, 1
    %v300 = vadd.f32 %v298, %v299
    %v301 = vadd.f32 %v210, 0.0
    %v302 = vadd.f32 %v216, 0.0
    %v303 = vadd.f32 %v222, 0.0
    %v304 = vadd.f32 %v228, 0.0
    %v305 = vadd.f32 %v234, 0.0
    %v306 = vadd.f32 %v240, 0.0
    %v307 = vadd.f32 %v246, 0.0
    %v308 = vadd.f32 %v252, 0.0
    %v309 = vadd.f32 %v258, 0.0
    %v310 = vadd.f32 %v264, 0.0
    %v311 = vadd.f32 %v270, 0.0
    %v312 = vadd.f32 %v276, 0.0
    %v313 = vadd.f32 %v282, 0.0
    %v314 = vadd.f32 %v288, 0.0
    %v315 = vadd.f32 %v294, 0.0
    %v316 = vadd.f32 %v300, 0.0
    %v317 = vld [vmem:[#allocation2 + $0x8] sm:$0xff]
    %v318 = vld [vmem:[#allocation2 + $0x28] sm:$0xff]
    %v319 = vld [vmem:[#allocation2 + $0x48] sm:$0xff]
    %v320 = vld [vmem:[#allocation2 + $0x68] sm:$0xff]
    %v321 = vld [vmem:[#allocation2 + $0x88] sm:$0xff]
    %v322 = vld [vmem:[#allocation2 + $0xa8] sm:$0xff]
    %v323 = vld [vmem:[#allocation2 + $0xc8] sm:$0xff]
    %v324 = vld [vmem:[#allocation2 + $0xe8] sm:$0xff]
    %v325 = vld [vmem:[#allocation2 + $0x108] sm:$0xff]
    %v326 = vld [vmem:[#allocation2 + $0x128] sm:$0xff]
    %v327 = vld [vmem:[#allocation2 + $0x148] sm:$0xff]
    %v328 = vld [vmem:[#allocation2 + $0x168] sm:$0xff]
    %v329 = vld [vmem:[#allocation2 + $0x188] sm:$0xff]
    %v330 = vld [vmem:[#allocation2 + $0x1a8] sm:$0xff]
    %v331 = vld [vmem:[#allocation2 + $0x1c8] sm:$0xff]
    %v332 = vld [vmem:[#allocation2 + $0x1e8] sm:$0xff]
    %s334 = sor.u32 256, 8
    %335 = vbcast.lane.b32.xlu0 %v80, %s334
    %v336 = vpop.permute.xlu0 %335
    %s338 = sor.u32 256, 8
    %339 = vbcast.lane.b32.xlu0 %v87, %s338
    %v340 = vpop.permute.xlu0 %339
    %s342 = sor.u32 256, 8
    %343 = vbcast.lane.b32.xlu0 %v94, %s342
    %v344 = vpop.permute.xlu0 %343
    %s346 = sor.u32 256, 8
    %347 = vbcast.lane.b32.xlu0 %v101, %s346
    %v348 = vpop.permute.xlu0 %347
    %s350 = sor.u32 256, 8
    %351 = vbcast.lane.b32.xlu0 %v108, %s350
    %v352 = vpop.permute.xlu0 %351
    %s354 = sor.u32 256, 8
    %355 = vbcast.lane.b32.xlu0 %v115, %s354
    %v356 = vpop.permute.xlu0 %355
    %s358 = sor.u32 256, 8
    %359 = vbcast.lane.b32.xlu0 %v122, %s358
    %v360 = vpop.permute.xlu0 %359
    %s362 = sor.u32 256, 8
    %363 = vbcast.lane.b32.xlu0 %v129, %s362
    %v364 = vpop.permute.xlu0 %363
    %s366 = sor.u32 256, 8
    %367 = vbcast.lane.b32.xlu0 %v136, %s366
    %v368 = vpop.permute.xlu0 %367
    %s370 = sor.u32 256, 8
    %371 = vbcast.lane.b32.xlu0 %v143, %s370
    %v372 = vpop.permute.xlu0 %371
    %s374 = sor.u32 256, 8
    %375 = vbcast.lane.b32.xlu0 %v150, %s374
    %v376 = vpop.permute.xlu0 %375
    %s378 = sor.u32 256, 8
    %379 = vbcast.lane.b32.xlu0 %v157, %s378
    %v380 = vpop.permute.xlu0 %379
    %s382 = sor.u32 256, 8
    %383 = vbcast.lane.b32.xlu0 %v164, %s382
    %v384 = vpop.permute.xlu0 %383
    %s386 = sor.u32 256, 8
    %387 = vbcast.lane.b32.xlu0 %v171, %s386
    %v388 = vpop.permute.xlu0 %387
    %s390 = sor.u32 256, 8
    %391 = vbcast.lane.b32.xlu0 %v178, %s390
    %v392 = vpop.permute.xlu0 %391
    %s394 = sor.u32 256, 8
    %395 = vbcast.lane.b32.xlu0 %v185, %s394
    %v396 = vpop.permute.xlu0 %395
    %v397 = vmul.f32 %v336, %v317
    %v398 = vmul.f32 %v340, %v318
    %v399 = vmul.f32 %v344, %v319
    %v400 = vmul.f32 %v348, %v320
    %v401 = vmul.f32 %v352, %v321
    %v402 = vmul.f32 %v356, %v322
    %v403 = vmul.f32 %v360, %v323
    %v404 = vmul.f32 %v364, %v324
    %v405 = vmul.f32 %v368, %v325
    %v406 = vmul.f32 %v372, %v326
    %v407 = vmul.f32 %v376, %v327
    %v408 = vmul.f32 %v380, %v328
    %v409 = vmul.f32 %v384, %v329
    %v410 = vmul.f32 %v388, %v330
    %v411 = vmul.f32 %v392, %v331
    %v412 = vmul.f32 %v396, %v332
    %v413 = vrot.slane %v397, 4
    %v414 = vadd.f32 %v397, %v413
    %v415 = vrot.slane %v414, 2
    %v416 = vadd.f32 %v414, %v415
    %v417 = vrot.slane %v416, 1
    %v418 = vadd.f32 %v416, %v417
    %v419 = vrot.slane %v398, 4
    %v420 = vadd.f32 %v398, %v419
    %v421 = vrot.slane %v420, 2
    %v422 = vadd.f32 %v420, %v421
    %v423 = vrot.slane %v422, 1
    %v424 = vadd.f32 %v422, %v423
    %v425 = vrot.slane %v399, 4
    %v426 = vadd.f32 %v399, %v425
    %v427 = vrot.slane %v426, 2
    %v428 = vadd.f32 %v426, %v427
    %v429 = vrot.slane %v428, 1
    %v430 = vadd.f32 %v428, %v429
    %v431 = vrot.slane %v400, 4
    %v432 = vadd.f32 %v400, %v431
    %v433 = vrot.slane %v432, 2
    %v434 = vadd.f32 %v432, %v433
    %v435 = vrot.slane %v434, 1
    %v436 = vadd.f32 %v434, %v435
    %v437 = vrot.slane %v401, 4
    %v438 = vadd.f32 %v401, %v437
    %v439 = vrot.slane %v438, 2
    %v440 = vadd.f32 %v438, %v439
    %v441 = vrot.slane %v440, 1
    %v442 = vadd.f32 %v440, %v441
    %v443 = vrot.slane %v402, 4
    %v444 = vadd.f32 %v402, %v443
    %v445 = vrot.slane %v444, 2
    %v446 = vadd.f32 %v444, %v445
    %v447 = vrot.slane %v446, 1
    %v448 = vadd.f32 %v446, %v447
    %v449 = vrot.slane %v403, 4
    %v450 = vadd.f32 %v403, %v449
    %v451 = vrot.slane %v450, 2
    %v452 = vadd.f32 %v450, %v451
    %v453 = vrot.slane %v452, 1
    %v454 = vadd.f32 %v452, %v453
    %v455 = vrot.slane %v404, 4
    %v456 = vadd.f32 %v404, %v455
    %v457 = vrot.slane %v456, 2
    %v458 = vadd.f32 %v456, %v457
    %v459 = vrot.slane %v458, 1
    %v460 = vadd.f32 %v458, %v459
    %v461 = vrot.slane %v405, 4
    %v462 = vadd.f32 %v405, %v461
    %v463 = vrot.slane %v462, 2
    %v464 = vadd.f32 %v462, %v463
    %v465 = vrot.slane %v464, 1
    %v466 = vadd.f32 %v464, %v465
    %v467 = vrot.slane %v406, 4
    %v468 = vadd.f32 %v406, %v467
    %v469 = vrot.slane %v468, 2
    %v470 = vadd.f32 %v468, %v469
    %v471 = vrot.slane %v470, 1
    %v472 = vadd.f32 %v470, %v471
    %v473 = vrot.slane %v407, 4
    %v474 = vadd.f32 %v407, %v473
    %v475 = vrot.slane %v474, 2
    %v476 = vadd.f32 %v474, %v475
    %v477 = vrot.slane %v476, 1
    %v478 = vadd.f32 %v476, %v477
    %v479 = vrot.slane %v408, 4
    %v480 = vadd.f32 %v408, %v479
    %v481 = vrot.slane %v480, 2
    %v482 = vadd.f32 %v480, %v481
    %v483 = vrot.slane %v482, 1
    %v484 = vadd.f32 %v482, %v483
    %v485 = vrot.slane %v409, 4
    %v486 = vadd.f32 %v409, %v485
    %v487 = vrot.slane %v486, 2
    %v488 = vadd.f32 %v486, %v487
    %v489 = vrot.slane %v488, 1
    %v490 = vadd.f32 %v488, %v489
    %v491 = vrot.slane %v410, 4
    %v492 = vadd.f32 %v410, %v491
    %v493 = vrot.slane %v492, 2
    %v494 = vadd.f32 %v492, %v493
    %v495 = vrot.slane %v494, 1
    %v496 = vadd.f32 %v494, %v495
    %v497 = vrot.slane %v411, 4
    %v498 = vadd.f32 %v411, %v497
    %v499 = vrot.slane %v498, 2
    %v500 = vadd.f32 %v498, %v499
    %v501 = vrot.slane %v500, 1
    %v502 = vadd.f32 %v500, %v501
    %v503 = vrot.slane %v412, 4
    %v504 = vadd.f32 %v412, %v503
    %v505 = vrot.slane %v504, 2
    %v506 = vadd.f32 %v504, %v505
    %v507 = vrot.slane %v506, 1
    %v508 = vadd.f32 %v506, %v507
    %v509 = vadd.f32 %v301, %v418
    %v510 = vadd.f32 %v302, %v424
    %v511 = vadd.f32 %v303, %v430
    %v512 = vadd.f32 %v304, %v436
    %v513 = vadd.f32 %v305, %v442
    %v514 = vadd.f32 %v306, %v448
    %v515 = vadd.f32 %v307, %v454
    %v516 = vadd.f32 %v308, %v460
    %v517 = vadd.f32 %v309, %v466
    %v518 = vadd.f32 %v310, %v472
    %v519 = vadd.f32 %v311, %v478
    %v520 = vadd.f32 %v312, %v484
    %v521 = vadd.f32 %v313, %v490
    %v522 = vadd.f32 %v314, %v496
    %v523 = vadd.f32 %v315, %v502
    %v524 = vadd.f32 %v316, %v508
    %v525 = vld [vmem:[#allocation2 + $0x10] sm:$0xff]
    %v526 = vld [vmem:[#allocation2 + $0x30] sm:$0xff]
    %v527 = vld [vmem:[#allocation2 + $0x50] sm:$0xff]
    %v528 = vld [vmem:[#allocation2 + $0x70] sm:$0xff]
    %v529 = vld [vmem:[#allocation2 + $0x90] sm:$0xff]
    %v530 = vld [vmem:[#allocation2 + $0xb0] sm:$0xff]
    %v531 = vld [vmem:[#allocation2 + $0xd0] sm:$0xff]
    %v532 = vld [vmem:[#allocation2 + $0xf0] sm:$0xff]
    %v533 = vld [vmem:[#allocation2 + $0x110] sm:$0xff]
    %v534 = vld [vmem:[#allocation2 + $0x130] sm:$0xff]
    %v535 = vld [vmem:[#allocation2 + $0x150] sm:$0xff]
    %v536 = vld [vmem:[#allocation2 + $0x170] sm:$0xff]
    %v537 = vld [vmem:[#allocation2 + $0x190] sm:$0xff]
    %v538 = vld [vmem:[#allocation2 + $0x1b0] sm:$0xff]
    %v539 = vld [vmem:[#allocation2 + $0x1d0] sm:$0xff]
    %v540 = vld [vmem:[#allocation2 + $0x1f0] sm:$0xff]
    %s542 = sor.u32 256, 16
    %543 = vbcast.lane.b32.xlu0 %v80, %s542
    %v544 = vpop.permute.xlu0 %543
    %s546 = sor.u32 256, 16
    %547 = vbcast.lane.b32.xlu0 %v87, %s546
    %v548 = vpop.permute.xlu0 %547
    %s550 = sor.u32 256, 16
    %551 = vbcast.lane.b32.xlu0 %v94, %s550
    %v552 = vpop.permute.xlu0 %551
    %s554 = sor.u32 256, 16
    %555 = vbcast.lane.b32.xlu0 %v101, %s554
    %v556 = vpop.permute.xlu0 %555
    %s558 = sor.u32 256, 16
    %559 = vbcast.lane.b32.xlu0 %v108, %s558
    %v560 = vpop.permute.xlu0 %559
    %s562 = sor.u32 256, 16
    %563 = vbcast.lane.b32.xlu0 %v115, %s562
    %v564 = vpop.permute.xlu0 %563
    %s566 = sor.u32 256, 16
    %567 = vbcast.lane.b32.xlu0 %v122, %s566
    %v568 = vpop.permute.xlu0 %567
    %s570 = sor.u32 256, 16
    %571 = vbcast.lane.b32.xlu0 %v129, %s570
    %v572 = vpop.permute.xlu0 %571
    %s574 = sor.u32 256, 16
    %575 = vbcast.lane.b32.xlu0 %v136, %s574
    %v576 = vpop.permute.xlu0 %575
    %s578 = sor.u32 256, 16
    %579 = vbcast.lane.b32.xlu0 %v143, %s578
    %v580 = vpop.permute.xlu0 %579
    %s582 = sor.u32 256, 16
    %583 = vbcast.lane.b32.xlu0 %v150, %s582
    %v584 = vpop.permute.xlu0 %583
    %s586 = sor.u32 256, 16
    %587 = vbcast.lane.b32.xlu0 %v157, %s586
    %v588 = vpop.permute.xlu0 %587
    %s590 = sor.u32 256, 16
    %591 = vbcast.lane.b32.xlu0 %v164, %s590
    %v592 = vpop.permute.xlu0 %591
    %s594 = sor.u32 256, 16
    %595 = vbcast.lane.b32.xlu0 %v171, %s594
    %v596 = vpop.permute.xlu0 %595
    %s598 = sor.u32 256, 16
    %599 = vbcast.lane.b32.xlu0 %v178, %s598
    %v600 = vpop.permute.xlu0 %599
    %s602 = sor.u32 256, 16
    %603 = vbcast.lane.b32.xlu0 %v185, %s602
    %v604 = vpop.permute.xlu0 %603
    %v605 = vmul.f32 %v544, %v525
    %v606 = vmul.f32 %v548, %v526
    %v607 = vmul.f32 %v552, %v527
    %v608 = vmul.f32 %v556, %v528
    %v609 = vmul.f32 %v560, %v529
    %v610 = vmul.f32 %v564, %v530
    %v611 = vmul.f32 %v568, %v531
    %v612 = vmul.f32 %v572, %v532
    %v613 = vmul.f32 %v576, %v533
    %v614 = vmul.f32 %v580, %v534
    %v615 = vmul.f32 %v584, %v535
    %v616 = vmul.f32 %v588, %v536
    %v617 = vmul.f32 %v592, %v537
    %v618 = vmul.f32 %v596, %v538
    %v619 = vmul.f32 %v600, %v539
    %v620 = vmul.f32 %v604, %v540
    %v621 = vrot.slane %v605, 4
    %v622 = vadd.f32 %v605, %v621
    %v623 = vrot.slane %v622, 2
    %v624 = vadd.f32 %v622, %v623
    %v625 = vrot.slane %v624, 1
    %v626 = vadd.f32 %v624, %v625
    %v627 = vrot.slane %v606, 4
    %v628 = vadd.f32 %v606, %v627
    %v629 = vrot.slane %v628, 2
    %v630 = vadd.f32 %v628, %v629
    %v631 = vrot.slane %v630, 1
    %v632 = vadd.f32 %v630, %v631
    %v633 = vrot.slane %v607, 4
    %v634 = vadd.f32 %v607, %v633
    %v635 = vrot.slane %v634, 2
    %v636 = vadd.f32 %v634, %v635
    %v637 = vrot.slane %v636, 1
    %v638 = vadd.f32 %v636, %v637
    %v639 = vrot.slane %v608, 4
    %v640 = vadd.f32 %v608, %v639
    %v641 = vrot.slane %v640, 2
    %v642 = vadd.f32 %v640, %v641
    %v643 = vrot.slane %v642, 1
    %v644 = vadd.f32 %v642, %v643
    %v645 = vrot.slane %v609, 4
    %v646 = vadd.f32 %v609, %v645
    %v647 = vrot.slane %v646, 2
    %v648 = vadd.f32 %v646, %v647
    %v649 = vrot.slane %v648, 1
    %v650 = vadd.f32 %v648, %v649
    %v651 = vrot.slane %v610, 4
    %v652 = vadd.f32 %v610, %v651
    %v653 = vrot.slane %v652, 2
    %v654 = vadd.f32 %v652, %v653
    %v655 = vrot.slane %v654, 1
    %v656 = vadd.f32 %v654, %v655
    %v657 = vrot.slane %v611, 4
    %v658 = vadd.f32 %v611, %v657
    %v659 = vrot.slane %v658, 2
    %v660 = vadd.f32 %v658, %v659
    %v661 = vrot.slane %v660, 1
    %v662 = vadd.f32 %v660, %v661
    %v663 = vrot.slane %v612, 4
    %v664 = vadd.f32 %v612, %v663
    %v665 = vrot.slane %v664, 2
    %v666 = vadd.f32 %v664, %v665
    %v667 = vrot.slane %v666, 1
    %v668 = vadd.f32 %v666, %v667
    %v669 = vrot.slane %v613, 4
    %v670 = vadd.f32 %v613, %v669
    %v671 = vrot.slane %v670, 2
    %v672 = vadd.f32 %v670, %v671
    %v673 = vrot.slane %v672, 1
    %v674 = vadd.f32 %v672, %v673
    %v675 = vrot.slane %v614, 4
    %v676 = vadd.f32 %v614, %v675
    %v677 = vrot.slane %v676, 2
    %v678 = vadd.f32 %v676, %v677
    %v679 = vrot.slane %v678, 1
    %v680 = vadd.f32 %v678, %v679
    %v681 = vrot.slane %v615, 4
    %v682 = vadd.f32 %v615, %v681
    %v683 = vrot.slane %v682, 2
    %v684 = vadd.f32 %v682, %v683
    %v685 = vrot.slane %v684, 1
    %v686 = vadd.f32 %v684, %v685
    %v687 = vrot.slane %v616, 4
    %v688 = vadd.f32 %v616, %v687
    %v689 = vrot.slane %v688, 2
    %v690 = vadd.f32 %v688, %v689
    %v691 = vrot.slane %v690, 1
    %v692 = vadd.f32 %v690, %v691
    %v693 = vrot.slane %v617, 4
    %v694 = vadd.f32 %v617, %v693
    %v695 = vrot.slane %v694, 2
    %v696 = vadd.f32 %v694, %v695
    %v697 = vrot.slane %v696, 1
    %v698 = vadd.f32 %v696, %v697
    %v699 = vrot.slane %v618, 4
    %v700 = vadd.f32 %v618, %v699
    %v701 = vrot.slane %v700, 2
    %v702 = vadd.f32 %v700, %v701
    %v703 = vrot.slane %v702, 1
    %v704 = vadd.f32 %v702, %v703
    %v705 = vrot.slane %v619, 4
    %v706 = vadd.f32 %v619, %v705
    %v707 = vrot.slane %v706, 2
    %v708 = vadd.f32 %v706, %v707
    %v709 = vrot.slane %v708, 1
    %v710 = vadd.f32 %v708, %v709
    %v711 = vrot.slane %v620, 4
    %v712 = vadd.f32 %v620, %v711
    %v713 = vrot.slane %v712, 2
    %v714 = vadd.f32 %v712, %v713
    %v715 = vrot.slane %v714, 1
    %v716 = vadd.f32 %v714, %v715
    %v717 = vadd.f32 %v509, %v626
    %v718 = vadd.f32 %v510, %v632
    %v719 = vadd.f32 %v511, %v638
    %v720 = vadd.f32 %v512, %v644
    %v721 = vadd.f32 %v513, %v650
    %v722 = vadd.f32 %v514, %v656
    %v723 = vadd.f32 %v515, %v662
    %v724 = vadd.f32 %v516, %v668
    %v725 = vadd.f32 %v517, %v674
    %v726 = vadd.f32 %v518, %v680
    %v727 = vadd.f32 %v519, %v686
    %v728 = vadd.f32 %v520, %v692
    %v729 = vadd.f32 %v521, %v698
    %v730 = vadd.f32 %v522, %v704
    %v731 = vadd.f32 %v523, %v710
    %v732 = vadd.f32 %v524, %v716
    %v733 = vld [vmem:[#allocation2 + $0x18] sm:$0xff]
    %v734 = vld [vmem:[#allocation2 + $0x38] sm:$0xff]
    %v735 = vld [vmem:[#allocation2 + $0x58] sm:$0xff]
    %v736 = vld [vmem:[#allocation2 + $0x78] sm:$0xff]
    %v737 = vld [vmem:[#allocation2 + $0x98] sm:$0xff]
    %v738 = vld [vmem:[#allocation2 + $0xb8] sm:$0xff]
    %v739 = vld [vmem:[#allocation2 + $0xd8] sm:$0xff]
    %v740 = vld [vmem:[#allocation2 + $0xf8] sm:$0xff]
    %v741 = vld [vmem:[#allocation2 + $0x118] sm:$0xff]
    %v742 = vld [vmem:[#allocation2 + $0x138] sm:$0xff]
    %v743 = vld [vmem:[#allocation2 + $0x158] sm:$0xff]
    %v744 = vld [vmem:[#allocation2 + $0x178] sm:$0xff]
    %v745 = vld [vmem:[#allocation2 + $0x198] sm:$0xff]
    %v746 = vld [vmem:[#allocation2 + $0x1b8] sm:$0xff]
    %v747 = vld [vmem:[#allocation2 + $0x1d8] sm:$0xff]
    %v748 = vld [vmem:[#allocation2 + $0x1f8] sm:$0xff]
    %s750 = sor.u32 256, 24
    %751 = vbcast.lane.b32.xlu0 %v80, %s750
    %v752 = vpop.permute.xlu0 %751
    %s754 = sor.u32 256, 24
    %755 = vbcast.lane.b32.xlu0 %v87, %s754
    %v756 = vpop.permute.xlu0 %755
    %s758 = sor.u32 256, 24
    %759 = vbcast.lane.b32.xlu0 %v94, %s758
    %v760 = vpop.permute.xlu0 %759
    %s762 = sor.u32 256, 24
    %763 = vbcast.lane.b32.xlu0 %v101, %s762
    %v764 = vpop.permute.xlu0 %763
    %s766 = sor.u32 256, 24
    %767 = vbcast.lane.b32.xlu0 %v108, %s766
    %v768 = vpop.permute.xlu0 %767
    %s770 = sor.u32 256, 24
    %771 = vbcast.lane.b32.xlu0 %v115, %s770
    %v772 = vpop.permute.xlu0 %771
    %s774 = sor.u32 256, 24
    %775 = vbcast.lane.b32.xlu0 %v122, %s774
    %v776 = vpop.permute.xlu0 %775
    %s778 = sor.u32 256, 24
    %779 = vbcast.lane.b32.xlu0 %v129, %s778
    %v780 = vpop.permute.xlu0 %779
    %s782 = sor.u32 256, 24
    %783 = vbcast.lane.b32.xlu0 %v136, %s782
    %v784 = vpop.permute.xlu0 %783
    %s786 = sor.u32 256, 24
    %787 = vbcast.lane.b32.xlu0 %v143, %s786
    %v788 = vpop.permute.xlu0 %787
    %s790 = sor.u32 256, 24
    %791 = vbcast.lane.b32.xlu0 %v150, %s790
    %v792 = vpop.permute.xlu0 %791
    %s794 = sor.u32 256, 24
    %795 = vbcast.lane.b32.xlu0 %v157, %s794
    %v796 = vpop.permute.xlu0 %795
    %s798 = sor.u32 256, 24
    %799 = vbcast.lane.b32.xlu0 %v164, %s798
    %v800 = vpop.permute.xlu0 %799
    %s802 = sor.u32 256, 24
    %803 = vbcast.lane.b32.xlu0 %v171, %s802
    %v804 = vpop.permute.xlu0 %803
    %s806 = sor.u32 256, 24
    %807 = vbcast.lane.b32.xlu0 %v178, %s806
    %v808 = vpop.permute.xlu0 %807
    %s810 = sor.u32 256, 24
    %811 = vbcast.lane.b32.xlu0 %v185, %s810
    %v812 = vpop.permute.xlu0 %811
    %v813 = vmul.f32 %v752, %v733
    %v814 = vmul.f32 %v756, %v734
    %v815 = vmul.f32 %v760, %v735
    %v816 = vmul.f32 %v764, %v736
    %v817 = vmul.f32 %v768, %v737
    %v818 = vmul.f32 %v772, %v738
    %v819 = vmul.f32 %v776, %v739
    %v820 = vmul.f32 %v780, %v740
    %v821 = vmul.f32 %v784, %v741
    %v822 = vmul.f32 %v788, %v742
    %v823 = vmul.f32 %v792, %v743
    %v824 = vmul.f32 %v796, %v744
    %v825 = vmul.f32 %v800, %v745
    %v826 = vmul.f32 %v804, %v746
    %v827 = vmul.f32 %v808, %v747
    %v828 = vmul.f32 %v812, %v748
    %v829 = vrot.slane %v813, 4
    %v830 = vadd.f32 %v813, %v829
    %v831 = vrot.slane %v830, 2
    %v832 = vadd.f32 %v830, %v831
    %v833 = vrot.slane %v832, 1
    %v834 = vadd.f32 %v832, %v833
    %v835 = vrot.slane %v814, 4
    %v836 = vadd.f32 %v814, %v835
    %v837 = vrot.slane %v836, 2
    %v838 = vadd.f32 %v836, %v837
    %v839 = vrot.slane %v838, 1
    %v840 = vadd.f32 %v838, %v839
    %v841 = vrot.slane %v815, 4
    %v842 = vadd.f32 %v815, %v841
    %v843 = vrot.slane %v842, 2
    %v844 = vadd.f32 %v842, %v843
    %v845 = vrot.slane %v844, 1
    %v846 = vadd.f32 %v844, %v845
    %v847 = vrot.slane %v816, 4
    %v848 = vadd.f32 %v816, %v847
    %v849 = vrot.slane %v848, 2
    %v850 = vadd.f32 %v848, %v849
    %v851 = vrot.slane %v850, 1
    %v852 = vadd.f32 %v850, %v851
    %v853 = vrot.slane %v817, 4
    %v854 = vadd.f32 %v817, %v853
    %v855 = vrot.slane %v854, 2
    %v856 = vadd.f32 %v854, %v855
    %v857 = vrot.slane %v856, 1
    %v858 = vadd.f32 %v856, %v857
    %v859 = vrot.slane %v818, 4
    %v860 = vadd.f32 %v818, %v859
    %v861 = vrot.slane %v860, 2
    %v862 = vadd.f32 %v860, %v861
    %v863 = vrot.slane %v862, 1
    %v864 = vadd.f32 %v862, %v863
    %v865 = vrot.slane %v819, 4
    %v866 = vadd.f32 %v819, %v865
    %v867 = vrot.slane %v866, 2
    %v868 = vadd.f32 %v866, %v867
    %v869 = vrot.slane %v868, 1
    %v870 = vadd.f32 %v868, %v869
    %v871 = vrot.slane %v820, 4
    %v872 = vadd.f32 %v820, %v871
    %v873 = vrot.slane %v872, 2
    %v874 = vadd.f32 %v872, %v873
    %v875 = vrot.slane %v874, 1
    %v876 = vadd.f32 %v874, %v875
    %v877 = vrot.slane %v821, 4
    %v878 = vadd.f32 %v821, %v877
    %v879 = vrot.slane %v878, 2
    %v880 = vadd.f32 %v878, %v879
    %v881 = vrot.slane %v880, 1
    %v882 = vadd.f32 %v880, %v881
    %v883 = vrot.slane %v822, 4
    %v884 = vadd.f32 %v822, %v883
    %v885 = vrot.slane %v884, 2
    %v886 = vadd.f32 %v884, %v885
    %v887 = vrot.slane %v886, 1
    %v888 = vadd.f32 %v886, %v887
    %v889 = vrot.slane %v823, 4
    %v890 = vadd.f32 %v823, %v889
    %v891 = vrot.slane %v890, 2
    %v892 = vadd.f32 %v890, %v891
    %v893 = vrot.slane %v892, 1
    %v894 = vadd.f32 %v892, %v893
    %v895 = vrot.slane %v824, 4
    %v896 = vadd.f32 %v824, %v895
    %v897 = vrot.slane %v896, 2
    %v898 = vadd.f32 %v896, %v897
    %v899 = vrot.slane %v898, 1
    %v900 = vadd.f32 %v898, %v899
    %v901 = vrot.slane %v825, 4
    %v902 = vadd.f32 %v825, %v901
    %v903 = vrot.slane %v902, 2
    %v904 = vadd.f32 %v902, %v903
    %v905 = vrot.slane %v904, 1
    %v906 = vadd.f32 %v904, %v905
    %v907 = vrot.slane %v826, 4
    %v908 = vadd.f32 %v826, %v907
    %v909 = vrot.slane %v908, 2
    %v910 = vadd.f32 %v908, %v909
    %v911 = vrot.slane %v910, 1
    %v912 = vadd.f32 %v910, %v911
    %v913 = vrot.slane %v827, 4
    %v914 = vadd.f32 %v827, %v913
    %v915 = vrot.slane %v914, 2
    %v916 = vadd.f32 %v914, %v915
    %v917 = vrot.slane %v916, 1
    %v918 = vadd.f32 %v916, %v917
    %v919 = vrot.slane %v828, 4
    %v920 = vadd.f32 %v828, %v919
    %v921 = vrot.slane %v920, 2
    %v922 = vadd.f32 %v920, %v921
    %v923 = vrot.slane %v922, 1
    %v924 = vadd.f32 %v922, %v923
    %v925 = vadd.f32 %v717, %v834
    %v926 = vadd.f32 %v718, %v840
    %v927 = vadd.f32 %v719, %v846
    %v928 = vadd.f32 %v720, %v852
    %v929 = vadd.f32 %v721, %v858
    %v930 = vadd.f32 %v722, %v864
    %v931 = vadd.f32 %v723, %v870
    %v932 = vadd.f32 %v724, %v876
    %v933 = vadd.f32 %v725, %v882
    %v934 = vadd.f32 %v726, %v888
    %v935 = vadd.f32 %v727, %v894
    %v936 = vadd.f32 %v728, %v900
    %v937 = vadd.f32 %v729, %v906
    %v938 = vadd.f32 %v730, %v912
    %v939 = vadd.f32 %v731, %v918
    %v940 = vadd.f32 %v732, %v924
    %v941 = vld [vmem:[#allocation7] sm:$0xff]
    %v942 = vld [vmem:[#allocation7 + $0x8] sm:$0xff]
    %v943 = vld [vmem:[#allocation7 + $0x10] sm:$0xff]
    %v944 = vld [vmem:[#allocation7 + $0x18] sm:$0xff]
    %v945 = vld [vmem:[#allocation7 + $0x20] sm:$0xff]
    %v946 = vld [vmem:[#allocation7 + $0x28] sm:$0xff]
    %v947 = vld [vmem:[#allocation7 + $0x30] sm:$0xff]
    %v948 = vld [vmem:[#allocation7 + $0x38] sm:$0xff]
    %v949 = vld [vmem:[#allocation7 + $0x40] sm:$0xff]
    %v950 = vld [vmem:[#allocation7 + $0x48] sm:$0xff]
    %v951 = vld [vmem:[#allocation7 + $0x50] sm:$0xff]
    %v952 = vld [vmem:[#allocation7 + $0x58] sm:$0xff]
    %v953 = vld [vmem:[#allocation7 + $0x60] sm:$0xff]
    %v954 = vld [vmem:[#allocation7 + $0x68] sm:$0xff]
    %v955 = vld [vmem:[#allocation7 + $0x70] sm:$0xff]
    %v956 = vld [vmem:[#allocation7 + $0x78] sm:$0xff]
    %v957 = vld [vmem:[%s3] sm:$0x1]
    %v959 = vlaneseq
    %v960 = vshrl.u32 %v959, 7
    %v961 = vsub.s32 0, %v960
    %v962 = vrot.slane %v957, %v961
    %vm980 = vcmask 1041409
    %v981 = vsel %vm980, %v926, %v925
    %vm982 = vcmask 1042434
    %v983 = vsel %vm982, %v927, %v981
    %vm984 = vcmask 1043459
    %v985 = vsel %vm984, %v928, %v983
    %vm986 = vcmask 1044484
    %v987 = vsel %vm986, %v929, %v985
    %vm988 = vcmask 1045509
    %v989 = vsel %vm988, %v930, %v987
    %vm990 = vcmask 1046534
    %v991 = vsel %vm990, %v931, %v989
    %vm992 = vcmask 1047559
    %v993 = vsel %vm992, %v932, %v991
    %v994 = vsel %vm980, %v934, %v933
    %v995 = vsel %vm982, %v935, %v994
    %v996 = vsel %vm984, %v936, %v995
    %v997 = vsel %vm986, %v937, %v996
    %v998 = vsel %vm988, %v938, %v997
    %v999 = vsel %vm990, %v939, %v998
    %v1000 = vsel %vm992, %v940, %v999
    %1003 = vmatprep.subr.mxu0 0.0
    %1004 = vmatpush1.msra.mxu0 %v941
    %1005 = vmatprep.subr.mxu0 0.0
    %1006 = vmatpush1.msra.mxu0 %v942
    %1007 = vmatprep.subr.mxu0 0.0
    %1008 = vmatpush1.msra.mxu0 %v943
    %1009 = vmatprep.subr.mxu0 0.0
    %1010 = vmatpush1.msra.mxu0 %v944
    %1011 = vmatprep.subr.mxu0 0.0
    %1012 = vmatpush1.msra.mxu0 %v945
    %1013 = vmatprep.subr.mxu0 0.0
    %1014 = vmatpush1.msra.mxu0 %v946
    %1015 = vmatprep.subr.mxu0 0.0
    %1016 = vmatpush1.msra.mxu0 %v947
    %1017 = vmatprep.subr.mxu0 0.0
    %1018 = vmatpush1.msra.mxu0 %v948
    %1019 = vmatprep.subr.mxu0 0.0
    %1020 = vmatpush1.msra.mxu0 %v949
    %1021 = vmatprep.subr.mxu0 0.0
    %1022 = vmatpush1.msra.mxu0 %v950
    %1023 = vmatprep.subr.mxu0 0.0
    %1024 = vmatpush1.msra.mxu0 %v951
    %1025 = vmatprep.subr.mxu0 0.0
    %1026 = vmatpush1.msra.mxu0 %v952
    %1027 = vmatprep.subr.mxu0 0.0
    %1028 = vmatpush1.msra.mxu0 %v953
    %1029 = vmatprep.subr.mxu0 0.0
    %1030 = vmatpush1.msra.mxu0 %v954
    %1031 = vmatprep.subr.mxu0 0.0
    %1032 = vmatpush1.msra.mxu0 %v955
    %1033 = vmatprep.subr.mxu0 0.0
    %1034 = vmatpush1.msra.mxu0 %v956
    %1035 = vmatprep.subr.mxu0 0.0
    %1036 = vmatpush1.msra.mxu0 0.0
    %1037 = vmatprep.subr.mxu0 0.0
    %1038 = vmatpush1.msra.mxu0 0.0
    %1039 = vmatprep.subr.mxu0 0.0
    %1040 = vmatpush1.msra.mxu0 0.0
    %1041 = vmatprep.subr.mxu0 0.0
    %1042 = vmatpush1.msra.mxu0 0.0
    %1043 = vmatprep.subr.mxu0 0.0
    %1044 = vmatpush1.msra.mxu0 0.0
    %1045 = vmatprep.subr.mxu0 0.0
    %1046 = vmatpush1.msra.mxu0 0.0
    %1047 = vmatprep.subr.mxu0 0.0
    %1048 = vmatpush1.msra.mxu0 0.0
    %1049 = vmatprep.subr.mxu0 0.0
    %1050 = vmatpush1.msra.mxu0 0.0
    %1051 = vmatprep.subr.mxu0 0.0
    %1052 = vmatpush1.msra.mxu0 0.0
    %1053 = vmatprep.subr.mxu0 0.0
    %1054 = vmatpush1.msra.mxu0 0.0
    %1055 = vmatprep.subr.mxu0 0.0
    %1056 = vmatpush1.msra.mxu0 0.0
    %1057 = vmatprep.subr.mxu0 0.0
    %1058 = vmatpush1.msra.mxu0 0.0
    %1059 = vmatprep.subr.mxu0 0.0
    %1060 = vmatpush1.msra.mxu0 0.0
    %1061 = vmatprep.subr.mxu0 0.0
    %1062 = vmatpush1.msra.mxu0 0.0
    %1063 = vmatprep.subr.mxu0 0.0
    %1064 = vmatpush1.msra.mxu0 0.0
    %1065 = vmatprep.subr.mxu0 0.0
    %1066 = vmatpush1.msra.mxu0 0.0
    %1067 = vmatprep.mubr.f32.mxu0 0.0
    %1068 = vmatmul.mubr.f32.gmra.mrb[0].mxu0 %v993
    %v1069 = vpop.f32.mrb[0].mxu0
    %v1070 = vadd.f32 %v962, %v1069
    %v1071 = vpop.f32.mrb[0].mxu0
    %1072 = vmatprep.mubr.f32.mxu0 0.0
    %1073 = vmatmul.mubr.f32.gmra.mrb[0].mxu0 %v1000
    %v1074 = vpop.f32.mrb[0].mxu0
    %v1075 = vadd.f32 %v962, %v1074
    %v1076 = vpop.f32.mrb[0].mxu0
    %1077 = vdwg.mxu0
    %1078 = vst [vmem:[#allocation8] sm:$0xff] %v1070
    %1079 = vst [vmem:[#allocation8 + $0x8] sm:$0xff] %v1075
    // Predicated region
    $region30: #{tpu_custom_call.1} parent=1 // pred_check
      _
    $region31: #{tpu_custom_call.1} parent=1 // pred_check_branch
      %1081 = sbr.rel (0) target = $region33
    $region32: #{tpu_custom_call.1} parent=1 // pred_region
      %s1083 = ssub.s32 256, 256
      %1084 = vsyncadd [#allocation4], %s1083
      %s1085 = sshll.u32 [#allocation8], 4
      %s1086 = int_to_ptr.vmem [resolvable:$true] %s1085
      %1091 = dma.vmem_to_hbm [thread:$0]  %s1086, 256, %s4, [#allocation4], 128, 128, 8
    $region33: #{tpu_custom_call.1} parent=1 // pred_fallthru
      _
    // Predicated region
    $region34: #{tpu_custom_call.1} parent=1 // pred_check
      _
    $region35: #{tpu_custom_call.1} parent=1 // pred_check_branch
      %1093 = sbr.rel (0) target = $region37
    $region36: #{tpu_custom_call.1} parent=1 // pred_region
      %1094 = dma.done [#allocation4], 256
    $region37: #{tpu_custom_call.1} parent=1 // pred_fallthru
      _
    %1095 = vsyncpa [#allocation3], 1
    %1096 = vsyncpa [#allocation6], 1
    %1097 = vsyncpa [#allocation4], 1

</llo_original>
